<compile_context>
chip_gen: v7x
topology: tpu7x:2x2x1
jax: 0.10.0
libtpu: 0.0.40
codegen_flags: <defaults>
</compile_context>

<pallas_src>
import functools

import jax
import jax.numpy as jnp
from jax.experimental import pallas as pl
from jax.experimental.pallas import tpu as pltpu

LANES = 128
SUBLANES = 8
MAX_TILE_ROWS = 1024          # (1024, 128) bf16 block = 256 KiB; 2 streams x 2 bufs ~= 1 MiB VMEM
NUM_PARALLEL = 2              # megacore sharding on v7x; harmless on single-TC v5e/v6e


def _stable_bce(x, t):
    """Numerically stable BCE-with-logits in f32: max(x,0) - x*t + log1p(exp(-|x|))."""
    return jnp.maximum(x, 0.0) - x * t + jnp.log1p(jnp.exp(-jnp.abs(x)))


# -----------------------------------------------------------------------------------------
# Path A: pred and target have identical shapes -> flattened lane-dense streaming reduction.
# -----------------------------------------------------------------------------------------
def _bce_sum_kernel(x_ref, t_ref, o_ref, *, n_valid, steps_per_chunk):
    """Partial BCE sum over a (p_chunks, steps) grid.

    Outer 'parallel' axis -> one lane-dense (8, 128) partial per chunk (megacore sharding).
    Inner 'arbitrary' axis -> streaming reduction; the output block itself is the resident
    f32 accumulator (its block index is constant along the inner axis).
    """
    pp = pl.program_id(0)
    ii = pl.program_id(1)

    @pl.when(ii == 0)
    def _():
        o_ref[...] = jnp.zeros_like(o_ref)

    tile_rows, lanes = x_ref.shape
    block_elems = tile_rows * lanes

    x = x_ref[...].astype(jnp.float32)
    t = t_ref[...].astype(jnp.float32)
    loss = _stable_bce(x, t)

    def _fold(v):
        # (tile_rows, 128) -> (8, 128): pure vreg adds (sublane/lane positions preserved).
        return v.reshape(tile_rows // SUBLANES, SUBLANES, lanes).sum(axis=0)

    # rem = number of valid elements in this (virtual, unclamped) block.
    blk = pp * steps_per_chunk + ii
    rem = n_valid - blk * block_elems            # int32 scalar; n_valid bound asserted in wrapper

    @pl.when(rem >= block_elems)                 # interior block: no iota / select on the hot path
    def _():
        o_ref[...] += _fold(loss)

    @pl.when(rem < block_elems)                  # ragged tail, lane-pad, or clamped overhang block
    def _():
        ids = (jax.lax.broadcasted_iota(jnp.int32, (tile_rows, lanes), 0) * lanes
               + jax.lax.broadcasted_iota(jnp.int32, (tile_rows, lanes), 1))
        o_ref[...] += _fold(jnp.where(ids < rem, loss, 0.0))


def _bce_same_shape_sum(logits, targets):
    """Sum of elementwise BCE-with-logits; native dtypes in, f32 upcast happens in-kernel."""
    assert logits.shape == targets.shape, (logits.shape, targets.shape)
    n = logits.size
    # TODO(synk): tensors with >~2^31 elements would need 64-bit / two-level index arithmetic.
    assert n < 2**31 - 4 * MAX_TILE_ROWS * LANES

    x = logits.reshape(-1)
    t = targets.reshape(-1)

    # Pad only as much as needed so rows are lane-dense (x128) and the row count is a
    # multiple of 8 (clean (8k, 128) blocks).  For typical seg-map sizes this is a no-op
    # (no HBM copy); padded elements are zero-filled and masked in-kernel.
    rows_128 = -(-n // LANES)
    if n % LANES == 0 and rows_128 % SUBLANES == 0:
        pad = 0
    elif rows_128 % SUBLANES == 0:
        pad = (-n) % LANES
    else:
        pad = (-n) % (SUBLANES * LANES)
    if pad:
        x = jnp.pad(x, (0, pad))
        t = jnp.pad(t, (0, pad))
    rows = (n + pad) // LANES
    assert rows % SUBLANES == 0

    x = x.reshape(rows, LANES)
    t = t.reshape(rows, LANES)

    tile_rows = min(MAX_TILE_ROWS, rows)         # multiple of 8, never exceeds the array
    g = pl.cdiv(rows, tile_rows)                 # number of real row-blocks
    p_chunks = NUM_PARALLEL if g >= NUM_PARALLEL else 1
    s = -(-g // p_chunks)                        # inner steps per parallel chunk

    if p_chunks * s == g:                        # exact split: no overhang, no clamp needed
        def idx_map(pp, ii):
            return (pp * s + ii, 0)
    else:                                        # <=1 overhang step: clamp + fully masked (rem<0)
        def idx_map(pp, ii):
            return (jnp.minimum(pp * s + ii, g - 1), 0)

    in_spec = pl.BlockSpec((tile_rows, LANES), idx_map)

    partials = pl.pallas_call(
        functools.partial(_bce_sum_kernel, n_valid=n, steps_per_chunk=s),
        out_shape=jax.ShapeDtypeStruct((p_chunks * SUBLANES, LANES), jnp.float32),
        grid_spec=pltpu.PrefetchScalarGridSpec(
            num_scalar_prefetch=0,
            grid=(p_chunks, s),
            in_specs=[in_spec, in_spec],
            out_specs=pl.BlockSpec((SUBLANES, LANES), lambda pp, ii: (pp, 0)),
        ),
        compiler_params=pltpu.CompilerParams(
            dimension_semantics=("parallel", "arbitrary")),
    )(x, t)
    return jnp.sum(partials)


# -----------------------------------------------------------------------------------------
# Path B: target lacks the channel dim -> reuse one target plane across all C channels.
# -----------------------------------------------------------------------------------------
def _bce_bcast_sum_kernel(x_ref, t_ref, o_ref):
    """Per-image BCE partial map.  The pred block is one (n, c) spatial plane; the target /
    output blocks depend only on n, so they stay resident in VMEM across the inner channel
    axis (target DMA'd once per image, output accumulated in place)."""
    @pl.when(pl.program_id(1) == 0)
    def _():
        o_ref[...] = jnp.zeros_like(o_ref)
    x = x_ref[...].astype(jnp.float32)
    t = t_ref[...].astype(jnp.float32)
    o_ref[...] += _stable_bce(x, t)


def _bce_bcast_sum(logits, targets):
    """Sum of BCE-with-logits where `targets` is (N, *spatial) and `logits` is (N, C, *spatial).

    The channel broadcast is never materialized in HBM: the channel grid axis is innermost
    and ignored by the target/output index_maps.
    """
    N, C = logits.shape[0], logits.shape[1]
    spatial = logits.shape[2:]
    assert targets.shape == (N,) + spatial, (logits.shape, targets.shape)
    zeros = (0,) * len(spatial)

    # TODO(synk): very large spatial planes (tens of MiB) would need an extra spatial grid
    # axis; typical 2-D segmentation maps fit comfortably in VMEM as a single block.
    pred_spec = pl.BlockSpec((None, None) + spatial, lambda n, c: (n, c) + zeros)
    tgt_spec = pl.BlockSpec((None,) + spatial, lambda n, c: (n,) + zeros)
    out_spec = pl.BlockSpec((None,) + spatial, lambda n, c: (n,) + zeros)

    partials = pl.pallas_call(
        _bce_bcast_sum_kernel,
        out_shape=jax.ShapeDtypeStruct((N,) + spatial, jnp.float32),
        grid=(N, C),
        in_specs=[pred_spec, tgt_spec],
        out_specs=out_spec,
        compiler_params=pltpu.CompilerParams(
            dimension_semantics=("parallel", "arbitrary")),
    )(logits, targets)
    return jnp.sum(partials)


# -----------------------------------------------------------------------------------------
# Module-level wrappers.
# -----------------------------------------------------------------------------------------
def _segmentation_loss(pred, target):
    """Mean BCE-with-logits stand-in for the external per-scale segmentation loss."""
    if target.shape == pred.shape:
        total = _bce_same_shape_sum(pred, target)
    elif (target.ndim == pred.ndim and pred.ndim >= 3 and target.shape[1] == 1
          and target.shape[0] == pred.shape[0] and target.shape[2:] == pred.shape[2:]):
        total = _bce_bcast_sum(pred, jnp.squeeze(target, axis=1))
    elif target.ndim == pred.ndim - 1 and target.shape == pred.shape[:1] + pred.shape[2:]:
        total = _bce_bcast_sum(pred, target)
    else:
        raise ValueError(f"Incompatible pred/target shapes: {pred.shape} vs {target.shape}")
    return total / jnp.float32(pred.size)


def _nearest_downsample(t, scale_factor):
    """F.interpolate(mode='nearest') with 1/scale_factor an integer -> strided slice.

    Matches the PyTorch forward: 4-D targets are downsampled over (H, W); 3-D targets are
    unsqueezed/squeezed around the channel dim, which is equivalent to slicing (H, W).
    TODO(synk): 5-D volumetric targets (D, H, W scaling) are not handled here.
    """
    stride = int(round(1.0 / scale_factor))
    return t[..., ::stride, ::stride]


def supervisor_loss(p, t,
                    num_losses=3,
                    scale_factors=(0.5, 0.25),
                    loss_weights=(1.0, 0.4, 0.2)):
    """JAX/Pallas equivalent of SupervisorLoss.forward."""
    all_scales = (1,) + tuple(scale_factors)
    assert num_losses == len(scale_factors) + 1 == len(loss_weights)

    if isinstance(p, tuple) and len(p) == num_losses:
        loss = jnp.float32(0.0)
        # The scales run as separate pallas_calls; fusing them would require an HBM concat
        # (a full extra copy), which costs more than three small launches.
        for i in range(num_losses):
            sf = all_scales[i]
            t_i = t if sf == 1 else _nearest_downsample(t, sf)
            loss = loss + jnp.float32(loss_weights[i]) * _segmentation_loss(p[i], t_i)
        return loss
    return _segmentation_loss(p, t)


if __name__ == "__main__":
    key = jax.random.PRNGKey(0)
    k0, k1, k2, kt, kt3 = jax.random.split(key, 5)

    N, C, H, W = 2, 4, 16, 16
    # Deep-supervision logits at scales 1, 0.5, 0.25 in native bf16 (kernels upcast to f32).
    p = (
        jax.random.normal(k0, (N, C, H, W), jnp.bfloat16),
        jax.random.normal(k1, (N, C, H // 2, W // 2), jnp.bfloat16),
        jax.random.normal(k2, (N, C, H // 4, W // 4), jnp.bfloat16),
    )
    # Hard 0/1 labels are exactly representable in bf16, so the target streams at 2 B/elem.
    # Soft f32 labels also work unchanged (the kernels upcast whatever dtype they receive).
    t = (jax.random.uniform(kt, (N, C, H, W)) > 0.5).astype(jnp.bfloat16)

    loss = jax.block_until_ready(supervisor_loss(p, t))

    # Pure-JAX reference (same math, no Pallas).
    def ref_bce(x, tt):
        x = x.astype(jnp.float32)
        tt = jnp.broadcast_to(tt, x.shape).astype(jnp.float32)
        return jnp.mean(jnp.maximum(x, 0.0) - x * tt + jnp.log1p(jnp.exp(-jnp.abs(x))))

    ref = (1.0 * ref_bce(p[0], t)
           + 0.4 * ref_bce(p[1], t[..., ::2, ::2])
           + 0.2 * ref_bce(p[2], t[..., ::4, ::4]))
    assert jnp.allclose(loss, ref, rtol=1e-5, atol=1e-5), (loss, ref)

    # (N, H, W)-target branch: channel broadcast handled in-kernel (target never replicated).
    t3 = (jax.random.uniform(kt3, (N, H, W)) > 0.5).astype(jnp.bfloat16)
    loss3 = jax.block_until_ready(supervisor_loss(p, t3))
    ref3 = (1.0 * ref_bce(p[0], t3[:, None])
            + 0.4 * ref_bce(p[1], t3[:, None, ::2, ::2])
            + 0.2 * ref_bce(p[2], t3[:, None, ::4, ::4]))
    assert jnp.allclose(loss3, ref3, rtol=1e-5, atol=1e-5), (loss3, ref3)

    print("KERNEL_OK")
</pallas_src>

<mosaic_0001>
module attributes {stable_mosaic.version = 11 : i64} {
  func.func @_bce_sum_kernel(%arg0: i32, %arg1: i32, %arg2: memref<16x128xbf16, #tpu.memory_space<vmem>>, %arg3: memref<16x128xbf16, #tpu.memory_space<vmem>>, %arg4: memref<8x128xf32, #tpu.memory_space<vmem>>) attributes {dimension_semantics = [#tpu.dimension_semantics<parallel>, #tpu.dimension_semantics<arbitrary>], iteration_bounds = array<i64: 1, 1>, scalar_prefetch = 0 : i64, scratch_operands = 0 : i64, tpu.core_type = #tpu.core_type<tc>, window_params = [{transform_indices = @transform_0, window_bounds = array<i64: 16, 128>}, {transform_indices = @transform_1, window_bounds = array<i64: 16, 128>}, {transform_indices = @transform_2, window_bounds = array<i64: 8, 128>}]} {
    %c0_i32 = arith.constant 0 : i32
    %0 = arith.cmpi eq, %arg1, %c0_i32 : i32
    %1 = arith.extui %0 : i1 to i32
    %c0_i32_0 = arith.constant 0 : i32
    %2 = arith.cmpi ne, %1, %c0_i32_0 : i32
    scf.if %2 {
      %cst_10 = arith.constant 0.000000e+00 : f32
      %27 = vector.broadcast %cst_10 : f32 to vector<8x128xf32>
      %c0_11 = arith.constant 0 : index
      %c0_12 = arith.constant 0 : index
      %28 = vector.load %arg4[%c0_11, %c0_12] : memref<8x128xf32, #tpu.memory_space<vmem>>, vector<8x128xf32>
      tpu.vector_store %arg4[%c0_11, %c0_12], %27 {strides = array<i32>} : memref<8x128xf32, #tpu.memory_space<vmem>>, vector<8x128xf32>,
    } else {
    }
    %c0 = arith.constant 0 : index
    %c0_1 = arith.constant 0 : index
    %3 = vector.load %arg2[%c0, %c0_1] : memref<16x128xbf16, #tpu.memory_space<vmem>>, vector<16x128xbf16>
    %4 = arith.extf %3 : vector<16x128xbf16> to vector<16x128xf32>
    %c0_2 = arith.constant 0 : index
    %c0_3 = arith.constant 0 : index
    %5 = vector.load %arg3[%c0_2, %c0_3] : memref<16x128xbf16, #tpu.memory_space<vmem>>, vector<16x128xbf16>
    %6 = arith.extf %5 : vector<16x128xbf16> to vector<16x128xf32>
    %cst = arith.constant 0.000000e+00 : f32
    %7 = vector.broadcast %cst : f32 to vector<16x128xf32>
    %8 = arith.maximumf %4, %7 : vector<16x128xf32>
    %9 = arith.mulf %4, %6 : vector<16x128xf32>
    %10 = arith.subf %8, %9 : vector<16x128xf32>
    %11 = math.absf %4 : vector<16x128xf32>
    %cst_4 = arith.constant 0.000000e+00 : f32
    %12 = vector.broadcast %cst_4 : f32 to vector<16x128xf32>
    %13 = arith.subf %12, %11 : vector<16x128xf32>
    %14 = math.exp %13 : vector<16x128xf32>
    %15 = math.log1p %14 : vector<16x128xf32>
    %16 = arith.addf %10, %15 : vector<16x128xf32>
    %c1_i32 = arith.constant 1 : i32
    %17 = arith.muli %arg0, %c1_i32 : i32
    %18 = arith.addi %17, %arg1 : i32
    %c2048_i32 = arith.constant 2048 : i32
    %19 = arith.muli %18, %c2048_i32 : i32
    %c2048_i32_5 = arith.constant 2048 : i32
    %20 = arith.subi %c2048_i32_5, %19 : i32
    %c2048_i32_6 = arith.constant 2048 : i32
    %21 = arith.cmpi sge, %20, %c2048_i32_6 : i32
    %22 = arith.extui %21 : i1 to i32
    %c0_i32_7 = arith.constant 0 : i32
    %23 = arith.cmpi ne, %22, %c0_i32_7 : i32
    scf.if %23 {
      %c0_10 = arith.constant 0 : index
      %c0_11 = arith.constant 0 : index
      %27 = vector.load %arg4[%c0_10, %c0_11] : memref<8x128xf32, #tpu.memory_space<vmem>>, vector<8x128xf32>
      %28 = vector.shape_cast %16 : vector<16x128xf32> to vector<2x8x128xf32>
      %cst_12 = arith.constant dense<0.000000e+00> : vector<8x128xf32>
      %29 = vector.multi_reduction <add>, %28, %cst_12 [0] : vector<2x8x128xf32> to vector<8x128xf32>
      %30 = arith.addf %27, %29 : vector<8x128xf32>
      %c0_13 = arith.constant 0 : index
      %c0_14 = arith.constant 0 : index
      %31 = vector.load %arg4[%c0_13, %c0_14] : memref<8x128xf32, #tpu.memory_space<vmem>>, vector<8x128xf32>
      tpu.vector_store %arg4[%c0_13, %c0_14], %30 {strides = array<i32>} : memref<8x128xf32, #tpu.memory_space<vmem>>, vector<8x128xf32>,
    } else {
    }
    %c2048_i32_8 = arith.constant 2048 : i32
    %24 = arith.cmpi slt, %20, %c2048_i32_8 : i32
    %25 = arith.extui %24 : i1 to i32
    %c0_i32_9 = arith.constant 0 : i32
    %26 = arith.cmpi ne, %25, %c0_i32_9 : i32
    scf.if %26 {
      %27 = tpu.iota {dimensions = array<i32: 0>} : vector<16x128xi32>
      %c128_i32 = arith.constant 128 : i32
      %28 = vector.broadcast %c128_i32 : i32 to vector<16x128xi32>
      %29 = arith.muli %27, %28 : vector<16x128xi32>
      %30 = tpu.iota {dimensions = array<i32: 1>} : vector<16x128xi32>
      %31 = arith.addi %29, %30 : vector<16x128xi32>
      %c0_10 = arith.constant 0 : index
      %c0_11 = arith.constant 0 : index
      %32 = vector.load %arg4[%c0_10, %c0_11] : memref<8x128xf32, #tpu.memory_space<vmem>>, vector<8x128xf32>
      %33 = vector.broadcast %20 : i32 to vector<16x128xi32>
      %34 = arith.cmpi slt, %31, %33 : vector<16x128xi32>
      %cst_12 = arith.constant 0.000000e+00 : f32
      %35 = vector.broadcast %cst_12 : f32 to vector<16x128xf32>
      %36 = arith.select %34, %16, %35 : vector<16x128xi1>, vector<16x128xf32>
      %37 = vector.shape_cast %36 : vector<16x128xf32> to vector<2x8x128xf32>
      %cst_13 = arith.constant dense<0.000000e+00> : vector<8x128xf32>
      %38 = vector.multi_reduction <add>, %37, %cst_13 [0] : vector<2x8x128xf32> to vector<8x128xf32>
      %39 = arith.addf %32, %38 : vector<8x128xf32>
      %c0_14 = arith.constant 0 : index
      %c0_15 = arith.constant 0 : index
      %40 = vector.load %arg4[%c0_14, %c0_15] : memref<8x128xf32, #tpu.memory_space<vmem>>, vector<8x128xf32>
      tpu.vector_store %arg4[%c0_14, %c0_15], %39 {strides = array<i32>} : memref<8x128xf32, #tpu.memory_space<vmem>>, vector<8x128xf32>,
    } else {
    }
    return
  }
  func.func @transform_0(%arg0: i32, %arg1: i32) -> (i32, i32) {
    %c1_i32 = arith.constant 1 : i32
    %0 = arith.muli %arg0, %c1_i32 : i32
    %1 = arith.addi %0, %arg1 : i32
    %c0_i32 = arith.constant 0 : i32
    %c0_i32_0 = arith.constant 0 : i32
    return %1, %c0_i32 : i32, i32
  }
  func.func @transform_1(%arg0: i32, %arg1: i32) -> (i32, i32) {
    %c1_i32 = arith.constant 1 : i32
    %0 = arith.muli %arg0, %c1_i32 : i32
    %1 = arith.addi %0, %arg1 : i32
    %c0_i32 = arith.constant 0 : i32
    %c0_i32_0 = arith.constant 0 : i32
    return %1, %c0_i32 : i32, i32
  }
  func.func @transform_2(%arg0: i32, %arg1: i32) -> (i32, i32) {
    %c0_i32 = arith.constant 0 : i32
    %c0_i32_0 = arith.constant 0 : i32
    return %arg0, %c0_i32 : i32, i32
  }
}

</mosaic_0001>

<llo_original>
// kernel: tpu_custom_call.1
$region0: #{tpu_custom_call.1}
  #allocation0 [shape = 'u32[]', space=smem, size = 0x4, offset = 0x4, fixed_abs, tag = 'smem constant byte address 0x4 - core index']
  #allocation1 [shape = 'u32[144,128]{1,0:T(1,128)}', space=vmem, size = 0x12000, scoped, tag = 'internal scratch']
  %s0 = inlined_call_operand.hbm [shape: bf16[16,128], index: 0, kind: input, shape index: {}]
  %s1 = inlined_call_operand.hbm [shape: bf16[16,128], index: 1, kind: input, shape index: {}]
  %s2 = inlined_call_operand.hbm [shape: f32[8,128], index: 2, kind: output, shape index: {}]
  %s3 = sld [smem:[#allocation0]]
  $region38: #{tpu_custom_call.1} parent=0
    _
  %s5 = ssub.s32 1, %s3
  %s6 = scalar_select 0, %s5, %s3
  $region1: #{tpu_custom_call.1} parent=0
    #allocation2 [shape = 'u8[4096]{0}', space=vmem, size = 0x1000, scoped, tag = 'input window, operand 0, single buffered']
    #allocation3 [shape = 's32[1]{0}', space=sflag, size = 0x4, scoped, tag = 'scoped memory for tpu_custom_call.1']
    #allocation4 [shape = 's32[1]{0}', space=sflag, size = 0x4, scoped, tag = 'scoped memory for tpu_custom_call.1']
    #allocation5 [shape = 'u8[4096]{0}', space=vmem, size = 0x1000, scoped, tag = 'input window, operand 1, single buffered']
    #allocation6 [shape = 's32[1]{0}', space=sflag, size = 0x4, scoped, tag = 'scoped memory for tpu_custom_call.1']
    #allocation7 [shape = 'u8[4096]{0}', space=vmem, size = 0x1000, scoped, tag = 'output window, operand 0, single buffered']
    %7 = vsyncpa [#allocation3], 0
    %8 = vsyncpa [#allocation6], 0
    %9 = vsyncpa [#allocation4], 0
    // Predicated region
    $region2: #{tpu_custom_call.1} parent=1 // pred_check
      _
    $region3: #{tpu_custom_call.1} parent=1 // pred_check_branch
      %11 = sbr.rel (0) target = $region5
    $region4: #{tpu_custom_call.1} parent=1 // pred_region
      %s12 = sadd.s32 0, 0
      %s13 = smul.u32 2, %s12
      %s15 = ssub.s32 128, 128
      %16 = vsyncadd [#allocation3], %s15
      %s17 = smul.addr %s13, 64
      %s18 = scalar_lea.hbm %s0, %s17
      %s19 = sshll.u32 [#allocation2], 4
      %s20 = int_to_ptr.vmem [resolvable:$true] %s19
      %25 = dma.hbm_to_vmem [thread:$0]  %s18, 128, %s20, [#allocation3], 64, 64, 4
    $region5: #{tpu_custom_call.1} parent=1 // pred_fallthru
      _
    // Predicated region
    $region6: #{tpu_custom_call.1} parent=1 // pred_check
      _
    $region7: #{tpu_custom_call.1} parent=1 // pred_check_branch
      %27 = sbr.rel (0) target = $region9
    $region8: #{tpu_custom_call.1} parent=1 // pred_region
      %s28 = sadd.s32 0, 0
      %s29 = smul.u32 2, %s28
      %s31 = ssub.s32 128, 128
      %32 = vsyncadd [#allocation6], %s31
      %s33 = smul.addr %s29, 64
      %s34 = scalar_lea.hbm %s1, %s33
      %s35 = sshll.u32 [#allocation5], 4
      %s36 = int_to_ptr.vmem [resolvable:$true] %s35
      %41 = dma.hbm_to_vmem [thread:$0]  %s34, 128, %s36, [#allocation6], 64, 64, 4
    $region9: #{tpu_custom_call.1} parent=1 // pred_fallthru
      _
    // Predicated region
    $region10: #{tpu_custom_call.1} parent=1 // pred_check
      _
    $region11: #{tpu_custom_call.1} parent=1 // pred_check_branch
      %43 = sbr.rel (0) target = $region13
    $region12: #{tpu_custom_call.1} parent=1 // pred_region
      %44 = dma.done [#allocation3], 128
    $region13: #{tpu_custom_call.1} parent=1 // pred_fallthru
      _
    // Predicated region
    $region14: #{tpu_custom_call.1} parent=1 // pred_check
      _
    $region15: #{tpu_custom_call.1} parent=1 // pred_check_branch
      %46 = sbr.rel (0) target = $region17
    $region16: #{tpu_custom_call.1} parent=1 // pred_region
      %47 = dma.done [#allocation6], 128
    $region17: #{tpu_custom_call.1} parent=1 // pred_fallthru
      _
    %s48 = sadd.s32 0, 0
    %s49 = smul.u32 2, %s48
    %s50 = sadd.s32 0, 0
    %s51 = smul.u32 2, %s50
    %p52 = scmp.eq.s32.totalorder 0, 0
    // Predicated region
    $region18: #{tpu_custom_call.1} parent=1 // pred_check
      %p53 = pneg %p52
    $region19: #{tpu_custom_call.1} parent=1 // pred_check_branch
      %55 = sbr.rel (%p53) target = $region21
    $region20: #{tpu_custom_call.1} parent=1 // pred_region
      %56 = vst [vmem:[#allocation7] sm:$0xff] 0.0
    $region21: #{tpu_custom_call.1} parent=1 // pred_fallthru
      _
    %v57 = vld [vmem:[#allocation2] sm:$0xf]
    %v58 = vld [vmem:[#allocation2 + $0x4] sm:$0xf]
    %v59 = vunpack.c.l.bf16 %v57
    %v60 = vunpack.c.l.bf16 %v58
    %v61 = vld [vmem:[#allocation5] sm:$0xf]
    %v62 = vld [vmem:[#allocation5 + $0x4] sm:$0xf]
    %v63 = vunpack.c.l.bf16 %v61
    %v64 = vunpack.c.l.bf16 %v62
    %v65 = vmax.f32 %v59, 0.0
    %v66 = vmax.f32 %v60, 0.0
    %v67 = vmul.f32 %v59, %v63
    %v68 = vmul.f32 %v60, %v64
    %v69 = vsub.f32 %v65, %v67
    %v70 = vsub.f32 %v66, %v68
    %v71 = vand.u32 2147483647, %v59
    %v72 = vand.u32 2147483647, %v60
    %v73 = vsub.f32 0.0, %v71
    %v74 = vsub.f32 0.0, %v72
    %v75 = vmul.f32 %v73, 1.442695
    %v76 = vpow.pop %v75
    %v77 = vmul.f32 %v74, 1.442695
    %v78 = vpow.pop %v77
    %v79 = vadd.f32 %v76, 1.0
    %v80 = vlog2.pop %v79
    %v81 = vmul.f32 %v80, 0.6931472
    %v82 = vmul.f32 -0.5, %v76
    %v83 = vadd.f32 %v82, 1.0
    %v84 = vmul.f32 %v83, %v76
    %v85 = vand.u32 2147483647, %v76
    %vm86 = vcmp.lt.f32.partialorder %v85, 0.0004427343
    %v87 = vsel %vm86, %v84, %v81
    %v88 = vadd.f32 %v78, 1.0
    %v89 = vlog2.pop %v88
    %v90 = vmul.f32 %v89, 0.6931472
    %v91 = vmul.f32 -0.5, %v78
    %v92 = vadd.f32 %v91, 1.0
    %v93 = vmul.f32 %v92, %v78
    %v94 = vand.u32 2147483647, %v78
    %vm95 = vcmp.lt.f32.partialorder %v94, 0.0004427343
    %v96 = vsel %vm95, %v93, %v90
    %v97 = vadd.f32 %v69, %v87
    %v98 = vadd.f32 %v70, %v96
    %s99 = sadd.s32 0, 0
    %s100 = smul.u32 %s99, 2048
    %s101 = ssub.s32 2048, %s100
    %p102 = scmp.ge.s32.totalorder %s101, 2048
    // Predicated region
    $region22: #{tpu_custom_call.1} parent=1 // pred_check
      %p103 = pneg %p102
    $region23: #{tpu_custom_call.1} parent=1 // pred_check_branch
      %105 = sbr.rel (%p103) target = $region25
    $region24: #{tpu_custom_call.1} parent=1 // pred_region
      %v106 = vld [vmem:[#allocation7] sm:$0xff]
      %v107 = vadd.f32 %v97, %v98
      %v108 = vadd.f32 %v106, %v107
      %109 = vst [vmem:[#allocation7] sm:$0xff] %v108
    $region25: #{tpu_custom_call.1} parent=1 // pred_fallthru
      _
    %p110 = scmp.lt.s32.totalorder %s101, 2048
    // Predicated region
    $region26: #{tpu_custom_call.1} parent=1 // pred_check
      %p111 = pneg %p110
    $region27: #{tpu_custom_call.1} parent=1 // pred_check_branch
      %113 = sbr.rel (%p111) target = $region29
    $region28: #{tpu_custom_call.1} parent=1 // pred_region
      %v114 = vlaneseq
      %v115 = vshrl.u32 %v114, 7
      %v116 = vadd.s32 %v115, 8
      %v117 = vmul.u32 %v115, 128
      %v118 = vmul.u32 %v116, 128
      %v119 = vlaneseq
      %v120 = vand.u32 %v119, 127
      %v121 = vadd.s32 %v117, %v120
      %v122 = vadd.s32 %v118, %v120
      %v123 = vld [vmem:[#allocation7] sm:$0xff]
      %v124 = vstv %s101
      %vm125 = vcmp.lt.s32.totalorder %v121, %v124
      %vm126 = vcmp.lt.s32.totalorder %v122, %v124
      %v127 = vsel %vm125, %v97, 0.0
      %v128 = vsel %vm126, %v98, 0.0
      %v129 = vadd.f32 %v127, %v128
      %v130 = vadd.f32 %v123, %v129
      %131 = vst [vmem:[#allocation7] sm:$0xff] %v130
    $region29: #{tpu_custom_call.1} parent=1 // pred_fallthru
      _
    // Predicated region
    $region30: #{tpu_custom_call.1} parent=1 // pred_check
      _
    $region31: #{tpu_custom_call.1} parent=1 // pred_check_branch
      %133 = sbr.rel (0) target = $region33
    $region32: #{tpu_custom_call.1} parent=1 // pred_region
      %s135 = ssub.s32 128, 128
      %136 = vsyncadd [#allocation4], %s135
      %s138 = sshll.u32 [#allocation7], 4
      %s139 = int_to_ptr.vmem [resolvable:$true] %s138
      %141 = dma.vmem_to_hbm [thread:$0]  %s139, 128, %s2, [#allocation4]
    $region33: #{tpu_custom_call.1} parent=1 // pred_fallthru
      _
    // Predicated region
    $region34: #{tpu_custom_call.1} parent=1 // pred_check
      _
    $region35: #{tpu_custom_call.1} parent=1 // pred_check_branch
      %143 = sbr.rel (0) target = $region37
    $region36: #{tpu_custom_call.1} parent=1 // pred_region
      %144 = dma.done [#allocation4], 128
    $region37: #{tpu_custom_call.1} parent=1 // pred_fallthru
      _
    %145 = vsyncpa [#allocation3], 1
    %146 = vsyncpa [#allocation6], 1
    %147 = vsyncpa [#allocation4], 1

</llo_original>
